<compile_context>
chip_gen: v5e
topology: v5e:2x2
jax: 0.10.0
libtpu: 0.0.40
codegen_flags: <defaults>
</compile_context>

<pallas_src>
import jax
import jax.numpy as jnp
from jax.experimental import pallas as pl
from jax.experimental.pallas import tpu as pltpu


# ---------------------------------------------------------------------------
# Pallas kernel: (patches @ W + b)  ->  the conv-as-matmul hot path
# ---------------------------------------------------------------------------
def _patch_embed_kernel(p_ref, w_ref, b_ref, o_ref):
    # p_ref: (tp, K) bf16   w_ref: (K, N) bf16   b_ref: (1, N) f32   o_ref: (tp, N) f32
    acc = jnp.dot(p_ref[...], w_ref[...], preferred_element_type=jnp.float32)
    o_ref[...] = (acc + b_ref[...]).astype(o_ref.dtype)


def patch_embed_matmul(patches, w_mat, bias, *, max_tp=1024):
    """patches: (B, P, K) bf16, w_mat: (K, N) bf16, bias: (N,) f32 -> (B, P, N) f32."""
    B, P, K = patches.shape
    Kw, N = w_mat.shape
    assert Kw == K

    # One large M-block per (batch, P-tile).  If P fits in a single tile we use the
    # full extent (always legal: full-dim blocks bypass the (8,128)/(16,128) rule);
    # otherwise 1024-row tiles (multiple of bf16 sublane packing 16) with the ragged
    # tail masked by Pallas — no jnp.pad / out[:M] round trips.
    tp = P if P <= max_tp else max_tp
    grid = (B, pl.cdiv(P, tp))

    bytes_accessed = (patches.size * patches.dtype.itemsize
                      + w_mat.size * w_mat.dtype.itemsize
                      + N * 4
                      + B * P * N * 4)
    cost = pl.CostEstimate(flops=2 * B * P * K * N,
                           transcendentals=0,
                           bytes_accessed=bytes_accessed)

    return pl.pallas_call(
        _patch_embed_kernel,
        out_shape=jax.ShapeDtypeStruct((B, P, N), jnp.float32),
        grid=grid,
        in_specs=[
            pl.BlockSpec((None, tp, K), lambda b, p: (b, p, 0)),   # patch slab
            pl.BlockSpec((K, N), lambda b, p: (0, 0)),             # weight (resident)
            pl.BlockSpec((1, N), lambda b, p: (0, 0)),             # bias
        ],
        out_specs=pl.BlockSpec((None, tp, N), lambda b, p: (b, p, 0)),
        compiler_params=pltpu.CompilerParams(
            dimension_semantics=("parallel", "parallel")),
        cost_estimate=cost,
    )(patches, w_mat, bias.reshape(1, N).astype(jnp.float32))


# ---------------------------------------------------------------------------
# AST tokenizer (JAX/Pallas version)
# ---------------------------------------------------------------------------
class ASTTokenizerPallas:
    def __init__(self, fstride, tstride, input_fdim, input_tdim,
                 patch_size=(16, 16), width=768, key=jax.random.PRNGKey(0)):
        if isinstance(patch_size, int):
            patch_size = (patch_size, patch_size)
        self.fstride = fstride
        self.tstride = tstride
        self.input_fdim = input_fdim
        self.input_tdim = input_tdim
        self.patch_size = patch_size
        self.width = width

        p_f, p_t = patch_size   # kernel extent over (F, T), as in Conv2d on (B,1,F,T)
        self.f_dim = (input_fdim - p_f) // fstride + 1
        self.t_dim = (input_tdim - p_t) // tstride + 1
        self.num_patches = self.f_dim * self.t_dim

        # Deterministic synthetic parameters (shapes as in nn.Conv2d / nn.Parameter).
        # TODO(synk): load_model_from_ckpt (.pth checkpoint surgery) has no in-script
        # equivalent; parameters are initialized randomly instead.
        k_w, k_b, k_p = jax.random.split(key, 3)
        self.conv_weight = (jax.random.normal(k_w, (width, 1, p_f, p_t), jnp.float32)
                            * 0.02)                                   # OIHW
        self.conv_bias = jax.random.normal(k_b, (width,), jnp.float32) * 0.02
        scale = width ** (-0.5)
        self.pos_emb = scale * jax.random.normal(
            k_p, (self.num_patches + 1, width), jnp.float32)

        # Flattened conv weight, row index = kf*p_t + kt (PyTorch OIHW row-major),
        # cast once to bf16 for the MXU path.
        self.w_mat = self.conv_weight.reshape(width, p_f * p_t).T.astype(jnp.bfloat16)

    def _extract_patches(self, x_bf16):
        """x_bf16: (B, T, F) -> (B, num_patches, K), patch index = fi*t_dim + ti,
        feature index = kf*p_t + kt (matches PyTorch conv weight flatten order)."""
        p_f, p_t = self.patch_size
        B = x_bf16.shape[0]
        # lhs spec "NWHC" maps: axis1 (T) -> 'W', axis2 (F) -> 'H'; rhs "HWIO" makes
        # conv-spatial-0 = F, conv-spatial-1 = T; out "NHWC" -> (B, f_dim, t_dim, K).
        patches = jax.lax.conv_general_dilated_patches(
            x_bf16[..., None],
            filter_shape=(p_f, p_t),
            window_strides=(self.fstride, self.tstride),
            padding="VALID",
            dimension_numbers=("NWHC", "HWIO", "NHWC"),
        )
        return patches.reshape(B, self.num_patches, p_f * p_t)

    def __call__(self, x):
        # x: (B, T, F)  == PyTorch forward input (B, input_tdim, input_fdim)
        B, T, F = x.shape
        assert F == self.input_fdim and T == self.input_tdim

        x_bf16 = x.astype(jnp.bfloat16)               # bf16 MXU inputs (fp32 accumulate)
        patches = self._extract_patches(x_bf16)       # (B, P, K) bf16, single HLO
        x_out = patch_embed_matmul(patches, self.w_mat, self.conv_bias)
        return {"x": x_out, "pos": self.pos_emb}

    # pure-JAX fp32 reference (conv path) for correctness checking
    def reference(self, x):
        x_nchw = jnp.transpose(x, (0, 2, 1))[:, None, :, :]   # (B,1,F,T)
        y = jax.lax.conv_general_dilated(
            x_nchw, self.conv_weight,
            window_strides=(self.fstride, self.tstride),
            padding="VALID",
            dimension_numbers=("NCHW", "OIHW", "NCHW"),
        ) + self.conv_bias[None, :, None, None]
        B = x.shape[0]
        y = y.reshape(B, self.width, -1).transpose(0, 2, 1)
        return {"x": y, "pos": self.pos_emb}


if __name__ == "__main__":
    key = jax.random.PRNGKey(0)
    k_param, k_x = jax.random.split(key)

    # Small, consistent shapes: fstride=tstride=8, input_fdim=32, input_tdim=48,
    # patch 16x16, width=128  ->  f_dim=3, t_dim=5, num_patches=15.
    tok = ASTTokenizerPallas(fstride=8, tstride=8, input_fdim=32, input_tdim=48,
                             patch_size=(16, 16), width=128, key=k_param)

    B = 2
    x = jax.random.normal(k_x, (B, tok.input_tdim, tok.input_fdim), jnp.float32)

    out = tok(x)
    jax.block_until_ready(out["x"])
    jax.block_until_ready(out["pos"])

    ref = tok.reference(x)
    assert out["x"].shape == (B, tok.num_patches, tok.width)
    assert out["pos"].shape == (tok.num_patches + 1, tok.width)
    # bf16 inputs / fp32 accumulate vs fp32 reference -> loosened tolerance.
    assert jnp.allclose(out["x"], ref["x"], atol=2e-2, rtol=2e-2)

    print("KERNEL_OK")
</pallas_src>

<mosaic_0001>
module attributes {stable_mosaic.version = 11 : i64} {
  func.func @_patch_embed_kernel(%arg0: i32, %arg1: i32, %arg2: memref<1x15x256xbf16, #tpu.memory_space<vmem>>, %arg3: memref<256x128xbf16, #tpu.memory_space<vmem>>, %arg4: memref<1x128xf32, #tpu.memory_space<vmem>>, %arg5: memref<1x15x128xf32, #tpu.memory_space<vmem>>) attributes {dimension_semantics = [#tpu.dimension_semantics<parallel>, #tpu.dimension_semantics<parallel>], iteration_bounds = array<i64: 2, 1>, scalar_prefetch = 0 : i64, scratch_operands = 0 : i64, tpu.core_type = #tpu.core_type<tc>, window_params = [{transform_indices = @transform_0, window_bounds = array<i64: 1, 15, 256>}, {pipeline_mode = #tpu.pipeline_mode<synchronous>, transform_indices = @transform_1, window_bounds = array<i64: 256, 128>}, {pipeline_mode = #tpu.pipeline_mode<synchronous>, transform_indices = @transform_2, window_bounds = array<i64: 1, 128>}, {transform_indices = @transform_3, window_bounds = array<i64: 1, 15, 128>}]} {
    %c0 = arith.constant 0 : index
    %c0_0 = arith.constant 0 : index
    %c0_1 = arith.constant 0 : index
    %0 = vector.load %arg2[%c0, %c0_0, %c0_1] : memref<1x15x256xbf16, #tpu.memory_space<vmem>>, vector<1x15x256xbf16>
    %1 = vector.shape_cast %0 : vector<1x15x256xbf16> to vector<15x256xbf16>
    %c0_2 = arith.constant 0 : index
    %c0_3 = arith.constant 0 : index
    %2 = vector.load %arg3[%c0_2, %c0_3] : memref<256x128xbf16, #tpu.memory_space<vmem>>, vector<256x128xbf16>
    %cst = arith.constant dense<0.000000e+00> : vector<15x128xf32>
    %3 = tpu.matmul %1, %2, %cst {dimension_numbers = #tpu.dot_dimension_numbers<[1], [0], [0], [1], [0, 0, 1, 1], [], []>} : vector<15x256xbf16>, vector<256x128xbf16>, vector<15x128xf32> -> vector<15x128xf32>
    %c0_4 = arith.constant 0 : index
    %c0_5 = arith.constant 0 : index
    %4 = vector.load %arg4[%c0_4, %c0_5] : memref<1x128xf32, #tpu.memory_space<vmem>>, vector<1x128xf32>
    %5 = vector.broadcast %4 : vector<1x128xf32> to vector<15x128xf32>
    %6 = arith.addf %3, %5 : vector<15x128xf32>
    %c0_6 = arith.constant 0 : index
    %c0_7 = arith.constant 0 : index
    %c0_8 = arith.constant 0 : index
    %7 = vector.load %arg5[%c0_6, %c0_7, %c0_8] : memref<1x15x128xf32, #tpu.memory_space<vmem>>, vector<1x15x128xf32>
    %8 = vector.shape_cast %7 : vector<1x15x128xf32> to vector<15x128xf32>
    %9 = vector.shape_cast %6 : vector<15x128xf32> to vector<1x15x128xf32>
    tpu.vector_store %arg5[%c0_6, %c0_7, %c0_8], %9 {strides = array<i32>} : memref<1x15x128xf32, #tpu.memory_space<vmem>>, vector<1x15x128xf32>,
    return
  }
  func.func @transform_0(%arg0: i32, %arg1: i32) -> (i32, i32, i32) {
    %c0_i32 = arith.constant 0 : i32
    %c0_i32_0 = arith.constant 0 : i32
    return %arg0, %arg1, %c0_i32 : i32, i32, i32
  }
  func.func @transform_1(%arg0: i32, %arg1: i32) -> (i32, i32) {
    %c0_i32 = arith.constant 0 : i32
    %c0_i32_0 = arith.constant 0 : i32
    %c0_i32_1 = arith.constant 0 : i32
    return %c0_i32, %c0_i32_0 : i32, i32
  }
  func.func @transform_2(%arg0: i32, %arg1: i32) -> (i32, i32) {
    %c0_i32 = arith.constant 0 : i32
    %c0_i32_0 = arith.constant 0 : i32
    %c0_i32_1 = arith.constant 0 : i32
    return %c0_i32, %c0_i32_0 : i32, i32
  }
  func.func @transform_3(%arg0: i32, %arg1: i32) -> (i32, i32, i32) {
    %c0_i32 = arith.constant 0 : i32
    %c0_i32_0 = arith.constant 0 : i32
    return %arg0, %arg1, %c0_i32 : i32, i32, i32
  }
}

</mosaic_0001>

<llo_original>
// kernel: tpu_custom_call.1
$region0: #{tpu_custom_call.1}
  #allocation0 [shape = 'u32[]', space=smem, size = 0x4, offset = 0x4, fixed_abs, tag = 'smem constant byte address 0x4 - core index']
  #allocation1 [shape = 'u32[72,128]{1,0:T(1,128)}', space=vmem, size = 0x9000, scoped, tag = 'internal scratch']
  %s0 = inlined_call_operand.vmem [shape: bf16[2,15,256], index: 0, kind: input, shape index: {}]
  %s1 = inlined_call_operand.hbm [shape: bf16[256,128], index: 1, kind: input, shape index: {}]
  %s2 = inlined_call_operand.vmem [shape: f32[1,128], index: 2, kind: input, shape index: {}]
  %s3 = inlined_call_operand.vmem [shape: f32[2,15,128], index: 3, kind: output, shape index: {}]
  %s4 = sld [smem:[#allocation0]]
  $region49: #{tpu_custom_call.1} parent=0
    _
  %s6 = ssub.s32 1, %s4
  %s7 = scalar_select 0, %s6, %s4
  $region1: #{tpu_custom_call.1} parent=0
    #allocation2 [shape = 'u8[65536]{0}', space=vmem, size = 0x10000, scoped, tag = 'input window, operand 1, single buffered']
    #allocation3 [shape = 's32[2]{0}', space=sflag, size = 0x8, scoped, tag = 'scoped memory for tpu_custom_call.1']
    %8 = vsyncpa [#allocation3], 0
    loop: start=0, step=1, limit=4
    $region2: #{tpu_custom_call.1} parent=1 // loop_pre_header
      _
    $region3: #{tpu_custom_call.1} parent=1 // loop_header
      %s10 = sphi 0, %s14
      %p11 = scmp.ge.s32.totalorder %s10, 4
      %s17 = sphi 0, %s29
      %s18 = sphi 0, %s25
      %s19 = sphi 0, %s17
      %s20 = sphi 0, %s18
      %s21 = sphi 0, %s19
      %s22 = sphi 0, %s20
      %s34 = sphi 0, %s36
      %s37 = sphi 0, %s34
      %s38 = sphi 0, %s37
      %s54 = sphi 0, %s38
      %s58 = sphi 0, %s58
      %s60 = sphi 0, %s58
      %s61 = sphi 0, %s60
      %s75 = sphi 0, %s61
      %s79 = sphi 0, %s79
      %s81 = sphi 0, %s79
      %s82 = sphi 0, %s81
      %s96 = sphi 0, %s82
      %s104 = sphi 0, %s106
      %s107 = sphi 0, %s104
      %s108 = sphi 0, %s107
      %s124 = sphi 0, %s108
    $region4: #{tpu_custom_call.1} parent=1 // loop_header_branch
      %13 = sbr.rel (%p11) target = $region8
    $region5: #{tpu_custom_call.1} parent=1 // loop_body
      %s15 = ssub.s32 %s10, 1
      %s16 = ssub.s32 %s10, 2
      %s23 = sadd.s32 1, %s18
      %p24 = scmp.ge.s32.totalorder %s23, 1
      %s25 = scalar_select %p24, 0, %s23
      %s26 = sadd.s32 1, %s17
      %s27 = scalar_select %p24, %s26, %s17
      %p28 = scmp.ge.s32.totalorder %s27, 2
      %s29 = scalar_select %p28, 0, %s27
      %s30 = ssub.s32 %s17, %s29
      %s31 = ssub.s32 %s18, %s25
      %s32 = sor.u32 %s30, %s31
      %p33 = scmp.eq.s32.totalorder %s32, 0
      %s35 = sadd.s32 %s34, 1
      %s36 = scalar_select %p33, %s34, %s35
      %p39 = pneg %p33
      %p40 = scmp.eq.s32.totalorder %s10, 1
      %p41 = por %p39, %p40
      %p42 = scmp.ne.s32.totalorder %s34, %s37
      %p43 = scmp.eq.s32.totalorder %s10, 0
      %p44 = por %p42, %p43
      %p45 = scmp.ne.s32.totalorder %s34, %s37
      %p46 = scmp.eq.s32.totalorder %s15, 1
      %p47 = por %p45, %p46
      %p48 = scmp.ne.s32.totalorder %s37, %s38
      %p49 = scmp.eq.s32.totalorder %s15, 0
      %p50 = por %p48, %p49
      %p51 = scmp.ne.s32.totalorder %s37, %s38
      %p52 = scmp.eq.s32.totalorder %s16, 1
      %p53 = por %p51, %p52
      %p55 = scmp.ne.s32.totalorder %s38, %s54
      %p56 = scmp.eq.s32.totalorder %s16, 0
      %p57 = por %p55, %p56
      %s59 = sadd.s32 %s58, 1
      %p62 = scmp.eq.s32.totalorder %s10, 1
      %p63 = scmp.ne.s32.totalorder %s58, %s60
      %p64 = scmp.eq.s32.totalorder %s10, 0
      %p65 = por %p63, %p64
      %p66 = scmp.ne.s32.totalorder %s58, %s60
      %p67 = scmp.eq.s32.totalorder %s15, 1
      %p68 = por %p66, %p67
      %p69 = scmp.ne.s32.totalorder %s60, %s61
      %p70 = scmp.eq.s32.totalorder %s15, 0
      %p71 = por %p69, %p70
      %p72 = scmp.ne.s32.totalorder %s60, %s61
      %p73 = scmp.eq.s32.totalorder %s16, 1
      %p74 = por %p72, %p73
      %p76 = scmp.ne.s32.totalorder %s61, %s75
      %p77 = scmp.eq.s32.totalorder %s16, 0
      %p78 = por %p76, %p77
      %s80 = sadd.s32 %s79, 1
      %p83 = scmp.eq.s32.totalorder %s10, 1
      %p84 = scmp.ne.s32.totalorder %s79, %s81
      %p85 = scmp.eq.s32.totalorder %s10, 0
      %p86 = por %p84, %p85
      %p87 = scmp.ne.s32.totalorder %s79, %s81
      %p88 = scmp.eq.s32.totalorder %s15, 1
      %p89 = por %p87, %p88
      %p90 = scmp.ne.s32.totalorder %s81, %s82
      %p91 = scmp.eq.s32.totalorder %s15, 0
      %p92 = por %p90, %p91
      %p93 = scmp.ne.s32.totalorder %s81, %s82
      %p94 = scmp.eq.s32.totalorder %s16, 1
      %p95 = por %p93, %p94
      %p97 = scmp.ne.s32.totalorder %s82, %s96
      %p98 = scmp.eq.s32.totalorder %s16, 0
      %p99 = por %p97, %p98
      %s100 = ssub.s32 %s17, %s29
      %s101 = ssub.s32 %s18, %s25
      %s102 = sor.u32 %s100, %s101
      %p103 = scmp.eq.s32.totalorder %s102, 0
      %s105 = sadd.s32 %s104, 1
      %s106 = scalar_select %p103, %s104, %s105
      %p109 = pneg %p103
      %p110 = scmp.eq.s32.totalorder %s10, 1
      %p111 = por %p109, %p110
      %p112 = scmp.ne.s32.totalorder %s104, %s107
      %p113 = scmp.eq.s32.totalorder %s10, 0
      %p114 = por %p112, %p113
      %p115 = scmp.ne.s32.totalorder %s104, %s107
      %p116 = scmp.eq.s32.totalorder %s15, 1
      %p117 = por %p115, %p116
      %p118 = scmp.ne.s32.totalorder %s107, %s108
      %p119 = scmp.eq.s32.totalorder %s15, 0
      %p120 = por %p118, %p119
      %p121 = scmp.ne.s32.totalorder %s107, %s108
      %p122 = scmp.eq.s32.totalorder %s16, 1
      %p123 = por %p121, %p122
      %p125 = scmp.ne.s32.totalorder %s108, %s124
      %p126 = scmp.eq.s32.totalorder %s16, 0
      %p127 = por %p125, %p126
      %p128 = scmp.le.s32.totalorder 1, %s10
      %p129 = scmp.lt.s32.totalorder %s10, 3
      %p130 = pnand %p128, %p129
      %p131 = pneg %p130
      // Predicated region
      $region9: #{tpu_custom_call.1} parent=5 // pred_check
        _
      $region10: #{tpu_custom_call.1} parent=5 // pred_check_branch
        %133 = sbr.rel (%p130) target = $region12
      $region11: #{tpu_custom_call.1} parent=5 // pred_region
        %s134 = ssub.s32 %s10, 1
        // Predicated region
        $region13: #{tpu_custom_call.1} parent=11 // pred_check
          %p135 = pneg %p71
        $region14: #{tpu_custom_call.1} parent=11 // pred_check_branch
          %137 = sbr.rel (%p135) target = $region16
        $region15: #{tpu_custom_call.1} parent=11 // pred_region
          %139 = vsyncadd [#allocation3], 0
          %s140 = sshll.u32 %s1, 4
          %s141 = int_to_ptr.hbm [resolvable:$true] %s140
          %s142 = sshll.u32 [#allocation2], 4
          %s143 = int_to_ptr.vmem [resolvable:$true] %s142
          %148 = dma.hbm_to_vmem [thread:$0]  %s141, 2048, %s143, [#allocation3], 64, 64, 4
        $region16: #{tpu_custom_call.1} parent=11 // pred_fallthru
          _
        // Predicated region
        $region17: #{tpu_custom_call.1} parent=11 // pred_check
          %p149 = pneg %p92
        $region18: #{tpu_custom_call.1} parent=11 // pred_check_branch
          %151 = sbr.rel (%p149) target = $region20
        $region19: #{tpu_custom_call.1} parent=11 // pred_region
          _
        $region20: #{tpu_custom_call.1} parent=11 // pred_fallthru
          _
      $region12: #{tpu_custom_call.1} parent=5 // pred_fallthru
        _
      %p152 = scmp.lt.s32.totalorder %s10, 2
      // Predicated region
      $region21: #{tpu_custom_call.1} parent=5 // pred_check
        %p153 = pneg %p152
      $region22: #{tpu_custom_call.1} parent=5 // pred_check_branch
        %155 = sbr.rel (%p153) target = $region24
      $region23: #{tpu_custom_call.1} parent=5 // pred_region
        // Predicated region
        $region25: #{tpu_custom_call.1} parent=23 // pred_check
          %p156 = pneg %p44
        $region26: #{tpu_custom_call.1} parent=23 // pred_check_branch
          %158 = sbr.rel (%p156) target = $region28
        $region27: #{tpu_custom_call.1} parent=23 // pred_region
          %s159 = smul.u32 2, %s18
          %p160 = scmp.lt.s32.totalorder %s17, 1
          %s161 = scalar_select %p160, %s17, 1
          %p162 = scmp.lt.s32.totalorder %s159, 1
          %s163 = scalar_select %p162, %s159, 1
          %s164 = smul.addr %s163, 2
          %s165 = smul.addr %s161, 4
          %s166 = sadd.s32 %s164, %s165
          %s167 = smul.addr %s166, 4
          %s168 = scalar_lea.vmem %s0, %s167
          %s169 = smul.u32 2, %s18
        $region28: #{tpu_custom_call.1} parent=23 // pred_fallthru
          _
      $region24: #{tpu_custom_call.1} parent=5 // pred_fallthru
        _
      %p170 = scmp.le.s32.totalorder 1, %s10
      %p171 = scmp.lt.s32.totalorder %s10, 3
      %p172 = pnand %p170, %p171
      %p173 = pneg %p172
      // Predicated region
      $region29: #{tpu_custom_call.1} parent=5 // pred_check
        _
      $region30: #{tpu_custom_call.1} parent=5 // pred_check_branch
        %175 = sbr.rel (%p172) target = $region32
      $region31: #{tpu_custom_call.1} parent=5 // pred_region
        %s176 = ssub.s32 %s10, 1
        // Predicated region
        $region33: #{tpu_custom_call.1} parent=31 // pred_check
          %p177 = pneg %p71
        $region34: #{tpu_custom_call.1} parent=31 // pred_check_branch
          %179 = sbr.rel (%p177) target = $region36
        $region35: #{tpu_custom_call.1} parent=31 // pred_region
          %181 = dma.done [#allocation3], 2048
        $region36: #{tpu_custom_call.1} parent=31 // pred_fallthru
          _
        %s182 = smul.u32 2, %s20
        %p183 = scmp.lt.s32.totalorder %s19, 1
        %s184 = scalar_select %p183, %s19, 1
        %p185 = scmp.lt.s32.totalorder %s182, 1
        %s186 = scalar_select %p185, %s182, 1
        %s187 = smul.addr %s186, 2
        %s188 = smul.addr %s184, 4
        %s189 = sadd.s32 %s187, %s188
        %s190 = smul.addr %s189, 4
        %s191 = scalar_lea.vmem %s0, %s190
        %p192 = pneg %p50
        %p193 = pneg %p47
        %p194 = pneg %p71
        %p195 = pneg %p68
        %p196 = pneg %p92
        %p197 = pneg %p89
        %p198 = pneg %p120
        %p199 = pneg %p117
        %s200 = smul.u32 2, %s20
        %p201 = scmp.lt.s32.totalorder %s19, 1
        %s202 = scalar_select %p201, %s19, 1
        %p203 = scmp.lt.s32.totalorder %s200, 1
        %s204 = scalar_select %p203, %s200, 1
        %s205 = smul.addr %s202, 2
        %s206 = sadd.s32 %s204, %s205
        %s207 = smul.addr %s206, 8
        %s208 = scalar_lea.vmem %s3, %s207
        %s209 = smul.u32 2, %s20
        %p210 = scmp.lt.s32.totalorder %s19, 1
        %s211 = scalar_select %p210, %s19, 1
        %p212 = scmp.lt.s32.totalorder %s209, 1
        %s213 = scalar_select %p212, %s209, 1
        %s214 = smul.addr %s213, 2
        %s215 = smul.addr %s211, 4
        %s216 = sadd.s32 %s214, %s215
        %s217 = smul.addr %s216, 4
        %s218 = scalar_lea.vmem %s0, %s217
        %s219 = smul.u32 2, %s20
        %s220 = smul.u32 2, %s20
        %p221 = scmp.lt.s32.totalorder %s19, 1
        %s222 = scalar_select %p221, %s19, 1
        %p223 = scmp.lt.s32.totalorder %s220, 1
        %s224 = scalar_select %p223, %s220, 1
        %s225 = smul.addr %s222, 2
        %s226 = sadd.s32 %s224, %s225
        %s227 = smul.addr %s226, 8
        %s228 = scalar_lea.vmem %s3, %s227
        %s229 = smul.u32 2, %s20
        %v230 = vld [vmem:[%s218] sm:$0xff]
        %v231 = vld [vmem:[%s218 + $0x8] sm:$0xff]
        %v232 = vld [vmem:[#allocation2] sm:$0xf]
        %v233 = vld [vmem:[#allocation2 + $0x4] sm:$0xf]
        %v234 = vld [vmem:[#allocation2 + $0x8] sm:$0xf]
        %v235 = vld [vmem:[#allocation2 + $0xc] sm:$0xf]
        %v236 = vld [vmem:[#allocation2 + $0x10] sm:$0xf]
        %v237 = vld [vmem:[#allocation2 + $0x14] sm:$0xf]
        %v238 = vld [vmem:[#allocation2 + $0x18] sm:$0xf]
        %v239 = vld [vmem:[#allocation2 + $0x1c] sm:$0xf]
        %v240 = vld [vmem:[#allocation2 + $0x20] sm:$0xf]
        %v241 = vld [vmem:[#allocation2 + $0x24] sm:$0xf]
        %v242 = vld [vmem:[#allocation2 + $0x28] sm:$0xf]
        %v243 = vld [vmem:[#allocation2 + $0x2c] sm:$0xf]
        %v244 = vld [vmem:[#allocation2 + $0x30] sm:$0xf]
        %v245 = vld [vmem:[#allocation2 + $0x34] sm:$0xf]
        %v246 = vld [vmem:[#allocation2 + $0x38] sm:$0xf]
        %v247 = vld [vmem:[#allocation2 + $0x3c] sm:$0xf]
        %v248 = vld [vmem:[#allocation2 + $0x40] sm:$0xf]
        %v249 = vld [vmem:[#allocation2 + $0x44] sm:$0xf]
        %v250 = vld [vmem:[#allocation2 + $0x48] sm:$0xf]
        %v251 = vld [vmem:[#allocation2 + $0x4c] sm:$0xf]
        %v252 = vld [vmem:[#allocation2 + $0x50] sm:$0xf]
        %v253 = vld [vmem:[#allocation2 + $0x54] sm:$0xf]
        %v254 = vld [vmem:[#allocation2 + $0x58] sm:$0xf]
        %v255 = vld [vmem:[#allocation2 + $0x5c] sm:$0xf]
        %v256 = vld [vmem:[#allocation2 + $0x60] sm:$0xf]
        %v257 = vld [vmem:[#allocation2 + $0x64] sm:$0xf]
        %v258 = vld [vmem:[#allocation2 + $0x68] sm:$0xf]
        %v259 = vld [vmem:[#allocation2 + $0x6c] sm:$0xf]
        %v260 = vld [vmem:[#allocation2 + $0x70] sm:$0xf]
        %v261 = vld [vmem:[#allocation2 + $0x74] sm:$0xf]
        %v262 = vld [vmem:[#allocation2 + $0x78] sm:$0xf]
        %v263 = vld [vmem:[#allocation2 + $0x7c] sm:$0xf]
        %v264 = vld [vmem:[%s2] sm:$0x1]
        %v266 = vperm.slane %v264, 0
        %v270 = vunpack.c.l.b16 %v230
        %v271 = vunpack.c.h.b16 %v230
        %v272 = vunpack.c.l.b16 %v231
        %v273 = vunpack.c.h.b16 %v231
        %v274 = vpack.c.b16 %v272, %v270
        %v275 = vpack.c.b16 %v273, %v271
        %v310 = vunpack.c.l.b16 %v232
        %v311 = vunpack.c.l.b16 %v233
        %v312 = vunpack.c.l.b16 %v234
        %v313 = vunpack.c.l.b16 %v235
        %v314 = vunpack.c.l.b16 %v236
        %v315 = vunpack.c.l.b16 %v237
        %v316 = vunpack.c.l.b16 %v238
        %v317 = vunpack.c.l.b16 %v239
        %v318 = vunpack.c.l.b16 %v240
        %v319 = vunpack.c.l.b16 %v241
        %v320 = vunpack.c.l.b16 %v242
        %v321 = vunpack.c.l.b16 %v243
        %v322 = vunpack.c.l.b16 %v244
        %v323 = vunpack.c.l.b16 %v245
        %v324 = vunpack.c.l.b16 %v246
        %v325 = vunpack.c.l.b16 %v247
        %v326 = vunpack.c.l.b16 %v248
        %v327 = vunpack.c.l.b16 %v249
        %v328 = vunpack.c.l.b16 %v250
        %v329 = vunpack.c.l.b16 %v251
        %v330 = vunpack.c.l.b16 %v252
        %v331 = vunpack.c.l.b16 %v253
        %v332 = vunpack.c.l.b16 %v254
        %v333 = vunpack.c.l.b16 %v255
        %v334 = vunpack.c.l.b16 %v256
        %v335 = vunpack.c.l.b16 %v257
        %v336 = vunpack.c.l.b16 %v258
        %v337 = vunpack.c.l.b16 %v259
        %v338 = vunpack.c.l.b16 %v260
        %v339 = vunpack.c.l.b16 %v261
        %v340 = vunpack.c.l.b16 %v262
        %v341 = vunpack.c.l.b16 %v263
        %v342 = vpack.c.b16 %v311, %v310
        %v343 = vpack.c.b16 %v313, %v312
        %v344 = vpack.c.b16 %v315, %v314
        %v345 = vpack.c.b16 %v317, %v316
        %v346 = vpack.c.b16 %v319, %v318
        %v347 = vpack.c.b16 %v321, %v320
        %v348 = vpack.c.b16 %v323, %v322
        %v349 = vpack.c.b16 %v325, %v324
        %v350 = vpack.c.b16 %v327, %v326
        %v351 = vpack.c.b16 %v329, %v328
        %v352 = vpack.c.b16 %v331, %v330
        %v353 = vpack.c.b16 %v333, %v332
        %v354 = vpack.c.b16 %v335, %v334
        %v355 = vpack.c.b16 %v337, %v336
        %v356 = vpack.c.b16 %v339, %v338
        %v357 = vpack.c.b16 %v341, %v340
        %374 = vmatpush.bf16.msra.mxu0 %v349
        %375 = vmatpush.bf16.msra.mxu0 %v348
        %376 = vmatpush.bf16.msra.mxu0 %v347
        %377 = vmatpush.bf16.msra.mxu0 %v346
        %378 = vmatpush.bf16.msra.mxu0 %v345
        %379 = vmatpush.bf16.msra.mxu0 %v344
        %380 = vmatpush.bf16.msra.mxu0 %v343
        %381 = vmatpush.bf16.msra.mxu0 %v342
        %382 = vmatmul.bf16.gmra.mxu0 %v274
        %v383 = vpop.f32.mrf.mxu0
        %v384 = vadd.f32 %v266, %v383
        %v385 = vpop.f32.mrf.mxu0
        %v386 = vadd.f32 %v266, %v385
        %387 = vdwg.mxu0
        %388 = vmatpush.bf16.msra.mxu0 %v357
        %389 = vmatpush.bf16.msra.mxu0 %v356
        %390 = vmatpush.bf16.msra.mxu0 %v355
        %391 = vmatpush.bf16.msra.mxu0 %v354
        %392 = vmatpush.bf16.msra.mxu0 %v353
        %393 = vmatpush.bf16.msra.mxu0 %v352
        %394 = vmatpush.bf16.msra.mxu0 %v351
        %395 = vmatpush.bf16.msra.mxu0 %v350
        %396 = vmatmul.bf16.gmra.mxu0 %v275
        %v397 = vpop.f32.mrf.mxu0
        %v398 = vadd.f32 %v384, %v397
        %v399 = vpop.f32.mrf.mxu0
        %v400 = vadd.f32 %v386, %v399
        %401 = vdwg.mxu0
        %402 = vst [vmem:[%s228] sm:$0xff] %v398
        %403 = vst [vmem:[%s228 + $0x8] sm:$0x7f] %v400
        %s404 = smul.u32 2, %s20
        %p405 = scmp.lt.s32.totalorder %s19, 1
        %s406 = scalar_select %p405, %s19, 1
        %p407 = scmp.lt.s32.totalorder %s404, 1
        %s408 = scalar_select %p407, %s404, 1
        %s409 = smul.addr %s406, 2
        %s410 = sadd.s32 %s408, %s409
        %s411 = smul.addr %s410, 8
        %s412 = scalar_lea.vmem %s3, %s411
        // Predicated region
        $region37: #{tpu_custom_call.1} parent=31 // pred_check
          %p413 = pneg %p117
        $region38: #{tpu_custom_call.1} parent=31 // pred_check_branch
          %415 = sbr.rel (%p413) target = $region40
        $region39: #{tpu_custom_call.1} parent=31 // pred_region
          %s416 = smul.u32 2, %s20
        $region40: #{tpu_custom_call.1} parent=31 // pred_fallthru
          _
      $region32: #{tpu_custom_call.1} parent=5 // pred_fallthru
        _
      %p417 = scmp.le.s32.totalorder 2, %s10
      // Predicated region
      $region41: #{tpu_custom_call.1} parent=5 // pred_check
        %p418 = pneg %p417
      $region42: #{tpu_custom_call.1} parent=5 // pred_check_branch
        %420 = sbr.rel (%p418) target = $region44
      $region43: #{tpu_custom_call.1} parent=5 // pred_region
        %s421 = ssub.s32 %s10, 2
        // Predicated region
        $region45: #{tpu_custom_call.1} parent=43 // pred_check
          %p422 = pneg %p123
        $region46: #{tpu_custom_call.1} parent=43 // pred_check_branch
          %424 = sbr.rel (%p422) target = $region48
        $region47: #{tpu_custom_call.1} parent=43 // pred_region
          %s425 = smul.u32 2, %s22
          %p426 = scmp.lt.s32.totalorder %s21, 1
          %s427 = scalar_select %p426, %s21, 1
          %p428 = scmp.lt.s32.totalorder %s425, 1
          %s429 = scalar_select %p428, %s425, 1
          %s430 = smul.addr %s427, 2
          %s431 = sadd.s32 %s429, %s430
          %s432 = smul.addr %s431, 8
          %s433 = scalar_lea.vmem %s3, %s432
        $region48: #{tpu_custom_call.1} parent=43 // pred_fallthru
          _
      $region44: #{tpu_custom_call.1} parent=5 // pred_fallthru
        _
    $region6: #{tpu_custom_call.1} parent=1 // loop_footer
      %s14 = sadd.s32 1, %s10
    $region7: #{tpu_custom_call.1} parent=1 // loop_footer_branch
      %9 = sbr.rel target = $region3
    $region8: #{tpu_custom_call.1} parent=1 // loop_exit
      _
    %434 = vsyncpa [#allocation3], 1
    %s435 = scalar_lea.sflag [#allocation3], 1
    %436 = vsyncpa %s435, 1

</llo_original>
